<compile_context>
chip_gen: v6e
topology: v6e:2x2x1
jax: 0.10.0
libtpu: 0.0.40
codegen_flags: <defaults>
</compile_context>

<pallas_src>
import functools

import jax
import jax.numpy as jnp
from jax.experimental import pallas as pl
from jax.experimental.pallas import tpu as pltpu


def _round_up(x, m):
    return ((x + m - 1) // m) * m


def _mlp_kernel(p_ref, x_ref, o_ref, *, in_dim, h1d, h2d, out_dim,
                w3_lane, b1_lane, b2_lane, b3_lane, w2_row):
    """All tensors are [features, batch_tile]; batch_tile sits on lanes.

    Param slab layout (f32, [n_rows, 128]):
      rows 0:h1d , lanes 0:in_dim              -> W1  (torch [out,in] layout)
      rows 0:h2d , lanes w3_lane:+out_dim      -> W3^T
      rows 0:h1d , lane  b1_lane               -> b1
      rows 0:h2d , lane  b2_lane               -> b2
      rows 0:out_dim, lane b3_lane             -> b3
      rows w2_row:+h2d, lanes 0:h1d            -> W2  (torch [out,in] layout)
    """
    x = x_ref[...]                                       # [in_dim, TB]

    # ---- fc1 + ReLU: K = in_dim unrolled VPU broadcast-FMAs -----------------
    acc1 = p_ref[0:h1d, 0:1] * x[0:1, :]                 # [h1d,1] * [1,TB]
    for k in range(1, in_dim):
        acc1 = acc1 + p_ref[0:h1d, k:k + 1] * x[k:k + 1, :]
    b1 = p_ref[0:h1d, b1_lane:b1_lane + 1]               # [h1d, 1]
    h1 = jnp.maximum(acc1 + b1, 0.0)                     # [h1d, TB]

    # ---- fc2 + ReLU: h1d-term unrolled VPU broadcast-FMAs -------------------
    acc2 = p_ref[w2_row:w2_row + h2d, 0:1] * h1[0:1, :]
    for k in range(1, h1d):
        acc2 = acc2 + p_ref[w2_row:w2_row + h2d, k:k + 1] * h1[k:k + 1, :]
    b2 = p_ref[0:h2d, b2_lane:b2_lane + 1]               # [h2d, 1]
    h2 = jnp.maximum(acc2 + b2, 0.0)                     # [h2d, TB]

    # ---- fc3: per-output-row multiply + cross-sublane reduce (no M=1 MXU) ---
    rows = []
    for j in range(out_dim):
        w3j = p_ref[0:h2d, w3_lane + j:w3_lane + j + 1]  # [h2d, 1]
        rows.append(jnp.sum(w3j * h2, axis=0, keepdims=True))   # [1, TB]
    out = rows[0] if out_dim == 1 else jnp.concatenate(rows, axis=0)
    b3 = p_ref[0:out_dim, b3_lane:b3_lane + 1]           # [out_dim, 1]
    o_ref[...] = (out + b3).astype(o_ref.dtype)


def splitted_model_block2(x, params, *, block_batch=2048):
    """x: [B, in_dim] float32.  params: torch-layout weights w:[out,in], b:[out]."""
    w1, b1 = params["w1"], params["b1"]
    w2, b2 = params["w2"], params["b2"]
    w3, b3 = params["w3"], params["b3"]

    in_dim = w1.shape[1]
    h1d = w1.shape[0]
    h2d = w2.shape[0]
    out_dim = w3.shape[0]
    B = x.shape[0]
    assert x.shape[1] == in_dim and w2.shape[1] == h1d and w3.shape[1] == h2d

    # ---- pack all params into one small resident slab -----------------------
    w3_lane = in_dim
    b1_lane = in_dim + out_dim
    b2_lane = b1_lane + 1
    b3_lane = b2_lane + 1
    n_lanes = 128
    assert max(b3_lane + 1, h1d) <= n_lanes, "parameter slab exceeds 128 lanes"
    w2_row = _round_up(max(h1d, h2d, out_dim), 8)
    n_rows = _round_up(w2_row + h2d, 8)

    f32 = jnp.float32
    slab = jnp.zeros((n_rows, n_lanes), f32)
    slab = slab.at[0:h1d, 0:in_dim].set(w1.astype(f32))
    slab = slab.at[0:h2d, w3_lane:w3_lane + out_dim].set(w3.T.astype(f32))
    slab = slab.at[0:h1d, b1_lane].set(b1.astype(f32))
    slab = slab.at[0:h2d, b2_lane].set(b2.astype(f32))
    slab = slab.at[0:out_dim, b3_lane].set(b3.astype(f32))
    slab = slab.at[w2_row:w2_row + h2d, 0:h1d].set(w2.astype(f32))

    # ---- lane-dense layout: batch on lanes, tiled grid over batch -----------
    tb = _round_up(min(int(block_batch), _round_up(B, 128)), 128)
    b_pad = _round_up(B, tb)
    xt = x.astype(f32).T                                  # [in_dim, B]
    if b_pad != B:
        xt = jnp.pad(xt, ((0, 0), (0, b_pad - B)))
    grid = (b_pad // tb,)

    kernel = functools.partial(
        _mlp_kernel, in_dim=in_dim, h1d=h1d, h2d=h2d, out_dim=out_dim,
        w3_lane=w3_lane, b1_lane=b1_lane, b2_lane=b2_lane, b3_lane=b3_lane,
        w2_row=w2_row)

    flops = 2 * B * (in_dim * h1d + h1d * h2d + h2d * out_dim)
    bytes_accessed = 4 * (B * in_dim + B * out_dim + n_rows * n_lanes)

    out_t = pl.pallas_call(
        kernel,
        out_shape=jax.ShapeDtypeStruct((out_dim, b_pad), f32),
        grid_spec=pltpu.PrefetchScalarGridSpec(
            num_scalar_prefetch=0,
            grid=grid,
            in_specs=[
                # parameter slab: constant block index -> stays resident (one DMA)
                pl.BlockSpec((n_rows, n_lanes), lambda i: (0, 0)),
                # x tile: [in_dim, tb], batch on lanes
                pl.BlockSpec((in_dim, tb), lambda i: (0, i)),
            ],
            out_specs=pl.BlockSpec((out_dim, tb), lambda i: (0, i)),
        ),
        compiler_params=pltpu.CompilerParams(
            dimension_semantics=("parallel",),
        ),
        cost_estimate=pl.CostEstimate(
            flops=flops, transcendentals=0, bytes_accessed=bytes_accessed),
    )(slab, xt)

    return out_t[:, :B].T                                 # back to [B, out_dim]


def init_params(key, input_dim=2, output_dim=1, hidden_dim_1=16, hidden_dim_2=16):
    """Deterministic init mirroring nn.Linear: W:[out,in], b:[out], U(-1/sqrt(fan_in), ..)."""
    ks = jax.random.split(key, 6)

    def linear(kw, kb, fan_in, fan_out):
        bound = 1.0 / jnp.sqrt(jnp.float32(fan_in))
        w = jax.random.uniform(kw, (fan_out, fan_in), jnp.float32, -bound, bound)
        b = jax.random.uniform(kb, (fan_out,), jnp.float32, -bound, bound)
        return w, b

    w1, b1 = linear(ks[0], ks[1], input_dim, hidden_dim_1)
    w2, b2 = linear(ks[2], ks[3], hidden_dim_1, hidden_dim_2)
    w3, b3 = linear(ks[4], ks[5], hidden_dim_2, output_dim)
    return {"w1": w1, "b1": b1, "w2": w2, "b2": b2, "w3": w3, "b3": b3}


def reference(x, p):
    h1 = jnp.maximum(x @ p["w1"].T + p["b1"], 0.0)
    h2 = jnp.maximum(h1 @ p["w2"].T + p["b2"], 0.0)
    return h2 @ p["w3"].T + p["b3"]


if __name__ == "__main__":
    key = jax.random.PRNGKey(0)
    kx, kp, kx2 = jax.random.split(key, 3)

    input_dim, output_dim = 2, 1
    params = init_params(kp, input_dim=input_dim, output_dim=output_dim,
                         hidden_dim_1=16, hidden_dim_2=16)

    # small batch (single grid step, padded to one 128-lane tile)
    batch = 8
    x = jax.random.normal(kx, (batch, input_dim), jnp.float32)
    out = jax.block_until_ready(splitted_model_block2(x, params))
    ref = reference(x, params)
    assert out.shape == (batch, output_dim), out.shape
    assert jnp.allclose(out, ref, atol=1e-5, rtol=1e-5), "mismatch vs reference (small batch)"

    # larger, non-multiple batch with a small block to exercise the batch grid
    batch2 = 300
    x2 = jax.random.normal(kx2, (batch2, input_dim), jnp.float32)
    out2 = jax.block_until_ready(splitted_model_block2(x2, params, block_batch=128))
    ref2 = reference(x2, params)
    assert out2.shape == (batch2, output_dim), out2.shape
    assert jnp.allclose(out2, ref2, atol=1e-5, rtol=1e-5), "mismatch vs reference (gridded batch)"

    print("KERNEL_OK")
</pallas_src>

<mosaic_0001>
module attributes {stable_mosaic.version = 11 : i64} {
  func.func @_mlp_kernel(%arg0: i32, %arg1: memref<32x128xf32, #tpu.memory_space<vmem>>, %arg2: memref<2x128xf32, #tpu.memory_space<vmem>>, %arg3: memref<1x128xf32, #tpu.memory_space<vmem>>) attributes {dimension_semantics = [#tpu.dimension_semantics<parallel>], iteration_bounds = array<i64: 1>, scalar_prefetch = 0 : i64, scratch_operands = 0 : i64, tpu.core_type = #tpu.core_type<tc>, window_params = [{pipeline_mode = #tpu.pipeline_mode<synchronous>, transform_indices = @transform_0, window_bounds = array<i64: 32, 128>}, {transform_indices = @transform_1, window_bounds = array<i64: 2, 128>}, {transform_indices = @transform_2, window_bounds = array<i64: 1, 128>}]} {
    %c0 = arith.constant 0 : index
    %c0_0 = arith.constant 0 : index
    %0 = vector.load %arg2[%c0, %c0_0] : memref<2x128xf32, #tpu.memory_space<vmem>>, vector<2x128xf32>
    %c0_1 = arith.constant 0 : index
    %c0_2 = arith.constant 0 : index
    %1 = vector.load %arg1[%c0_1, %c0_2] : memref<32x128xf32, #tpu.memory_space<vmem>>, vector<16x1xf32>
    %2 = vector.extract_strided_slice %0 {offsets = [0, 0], sizes = [1, 128], strides = [1, 1]} : vector<2x128xf32> to vector<1x128xf32>
    %3 = vector.broadcast %1 : vector<16x1xf32> to vector<16x128xf32>
    %4 = vector.broadcast %2 : vector<1x128xf32> to vector<16x128xf32>
    %5 = arith.mulf %3, %4 : vector<16x128xf32>
    %c0_3 = arith.constant 0 : index
    %c1 = arith.constant 1 : index
    %6 = vector.load %arg1[%c0_3, %c1] : memref<32x128xf32, #tpu.memory_space<vmem>>, vector<16x1xf32>
    %7 = vector.extract_strided_slice %0 {offsets = [1, 0], sizes = [1, 128], strides = [1, 1]} : vector<2x128xf32> to vector<1x128xf32>
    %8 = vector.broadcast %6 : vector<16x1xf32> to vector<16x128xf32>
    %9 = vector.broadcast %7 : vector<1x128xf32> to vector<16x128xf32>
    %10 = arith.mulf %8, %9 : vector<16x128xf32>
    %11 = arith.addf %5, %10 : vector<16x128xf32>
    %c0_4 = arith.constant 0 : index
    %c3 = arith.constant 3 : index
    %12 = vector.load %arg1[%c0_4, %c3] : memref<32x128xf32, #tpu.memory_space<vmem>>, vector<16x1xf32>
    %13 = vector.broadcast %12 : vector<16x1xf32> to vector<16x128xf32>
    %14 = arith.addf %11, %13 : vector<16x128xf32>
    %cst = arith.constant 0.000000e+00 : f32
    %15 = vector.broadcast %cst : f32 to vector<16x128xf32>
    %16 = arith.maximumf %14, %15 : vector<16x128xf32>
    %c16 = arith.constant 16 : index
    %c0_5 = arith.constant 0 : index
    %17 = vector.load %arg1[%c16, %c0_5] : memref<32x128xf32, #tpu.memory_space<vmem>>, vector<16x1xf32>
    %18 = vector.extract_strided_slice %16 {offsets = [0, 0], sizes = [1, 128], strides = [1, 1]} : vector<16x128xf32> to vector<1x128xf32>
    %19 = vector.broadcast %17 : vector<16x1xf32> to vector<16x128xf32>
    %20 = vector.broadcast %18 : vector<1x128xf32> to vector<16x128xf32>
    %21 = arith.mulf %19, %20 : vector<16x128xf32>
    %c16_6 = arith.constant 16 : index
    %c1_7 = arith.constant 1 : index
    %22 = vector.load %arg1[%c16_6, %c1_7] : memref<32x128xf32, #tpu.memory_space<vmem>>, vector<16x1xf32>
    %23 = vector.extract_strided_slice %16 {offsets = [1, 0], sizes = [1, 128], strides = [1, 1]} : vector<16x128xf32> to vector<1x128xf32>
    %24 = vector.broadcast %22 : vector<16x1xf32> to vector<16x128xf32>
    %25 = vector.broadcast %23 : vector<1x128xf32> to vector<16x128xf32>
    %26 = arith.mulf %24, %25 : vector<16x128xf32>
    %27 = arith.addf %21, %26 : vector<16x128xf32>
    %c16_8 = arith.constant 16 : index
    %c2 = arith.constant 2 : index
    %28 = vector.load %arg1[%c16_8, %c2] : memref<32x128xf32, #tpu.memory_space<vmem>>, vector<16x1xf32>
    %29 = vector.extract_strided_slice %16 {offsets = [2, 0], sizes = [1, 128], strides = [1, 1]} : vector<16x128xf32> to vector<1x128xf32>
    %30 = vector.broadcast %28 : vector<16x1xf32> to vector<16x128xf32>
    %31 = vector.broadcast %29 : vector<1x128xf32> to vector<16x128xf32>
    %32 = arith.mulf %30, %31 : vector<16x128xf32>
    %33 = arith.addf %27, %32 : vector<16x128xf32>
    %c16_9 = arith.constant 16 : index
    %c3_10 = arith.constant 3 : index
    %34 = vector.load %arg1[%c16_9, %c3_10] : memref<32x128xf32, #tpu.memory_space<vmem>>, vector<16x1xf32>
    %35 = vector.extract_strided_slice %16 {offsets = [3, 0], sizes = [1, 128], strides = [1, 1]} : vector<16x128xf32> to vector<1x128xf32>
    %36 = vector.broadcast %34 : vector<16x1xf32> to vector<16x128xf32>
    %37 = vector.broadcast %35 : vector<1x128xf32> to vector<16x128xf32>
    %38 = arith.mulf %36, %37 : vector<16x128xf32>
    %39 = arith.addf %33, %38 : vector<16x128xf32>
    %c16_11 = arith.constant 16 : index
    %c4 = arith.constant 4 : index
    %40 = vector.load %arg1[%c16_11, %c4] : memref<32x128xf32, #tpu.memory_space<vmem>>, vector<16x1xf32>
    %41 = vector.extract_strided_slice %16 {offsets = [4, 0], sizes = [1, 128], strides = [1, 1]} : vector<16x128xf32> to vector<1x128xf32>
    %42 = vector.broadcast %40 : vector<16x1xf32> to vector<16x128xf32>
    %43 = vector.broadcast %41 : vector<1x128xf32> to vector<16x128xf32>
    %44 = arith.mulf %42, %43 : vector<16x128xf32>
    %45 = arith.addf %39, %44 : vector<16x128xf32>
    %c16_12 = arith.constant 16 : index
    %c5 = arith.constant 5 : index
    %46 = vector.load %arg1[%c16_12, %c5] : memref<32x128xf32, #tpu.memory_space<vmem>>, vector<16x1xf32>
    %47 = vector.extract_strided_slice %16 {offsets = [5, 0], sizes = [1, 128], strides = [1, 1]} : vector<16x128xf32> to vector<1x128xf32>
    %48 = vector.broadcast %46 : vector<16x1xf32> to vector<16x128xf32>
    %49 = vector.broadcast %47 : vector<1x128xf32> to vector<16x128xf32>
    %50 = arith.mulf %48, %49 : vector<16x128xf32>
    %51 = arith.addf %45, %50 : vector<16x128xf32>
    %c16_13 = arith.constant 16 : index
    %c6 = arith.constant 6 : index
    %52 = vector.load %arg1[%c16_13, %c6] : memref<32x128xf32, #tpu.memory_space<vmem>>, vector<16x1xf32>
    %53 = vector.extract_strided_slice %16 {offsets = [6, 0], sizes = [1, 128], strides = [1, 1]} : vector<16x128xf32> to vector<1x128xf32>
    %54 = vector.broadcast %52 : vector<16x1xf32> to vector<16x128xf32>
    %55 = vector.broadcast %53 : vector<1x128xf32> to vector<16x128xf32>
    %56 = arith.mulf %54, %55 : vector<16x128xf32>
    %57 = arith.addf %51, %56 : vector<16x128xf32>
    %c16_14 = arith.constant 16 : index
    %c7 = arith.constant 7 : index
    %58 = vector.load %arg1[%c16_14, %c7] : memref<32x128xf32, #tpu.memory_space<vmem>>, vector<16x1xf32>
    %59 = vector.extract_strided_slice %16 {offsets = [7, 0], sizes = [1, 128], strides = [1, 1]} : vector<16x128xf32> to vector<1x128xf32>
    %60 = vector.broadcast %58 : vector<16x1xf32> to vector<16x128xf32>
    %61 = vector.broadcast %59 : vector<1x128xf32> to vector<16x128xf32>
    %62 = arith.mulf %60, %61 : vector<16x128xf32>
    %63 = arith.addf %57, %62 : vector<16x128xf32>
    %c16_15 = arith.constant 16 : index
    %c8 = arith.constant 8 : index
    %64 = vector.load %arg1[%c16_15, %c8] : memref<32x128xf32, #tpu.memory_space<vmem>>, vector<16x1xf32>
    %65 = vector.extract_strided_slice %16 {offsets = [8, 0], sizes = [1, 128], strides = [1, 1]} : vector<16x128xf32> to vector<1x128xf32>
    %66 = vector.broadcast %64 : vector<16x1xf32> to vector<16x128xf32>
    %67 = vector.broadcast %65 : vector<1x128xf32> to vector<16x128xf32>
    %68 = arith.mulf %66, %67 : vector<16x128xf32>
    %69 = arith.addf %63, %68 : vector<16x128xf32>
    %c16_16 = arith.constant 16 : index
    %c9 = arith.constant 9 : index
    %70 = vector.load %arg1[%c16_16, %c9] : memref<32x128xf32, #tpu.memory_space<vmem>>, vector<16x1xf32>
    %71 = vector.extract_strided_slice %16 {offsets = [9, 0], sizes = [1, 128], strides = [1, 1]} : vector<16x128xf32> to vector<1x128xf32>
    %72 = vector.broadcast %70 : vector<16x1xf32> to vector<16x128xf32>
    %73 = vector.broadcast %71 : vector<1x128xf32> to vector<16x128xf32>
    %74 = arith.mulf %72, %73 : vector<16x128xf32>
    %75 = arith.addf %69, %74 : vector<16x128xf32>
    %c16_17 = arith.constant 16 : index
    %c10 = arith.constant 10 : index
    %76 = vector.load %arg1[%c16_17, %c10] : memref<32x128xf32, #tpu.memory_space<vmem>>, vector<16x1xf32>
    %77 = vector.extract_strided_slice %16 {offsets = [10, 0], sizes = [1, 128], strides = [1, 1]} : vector<16x128xf32> to vector<1x128xf32>
    %78 = vector.broadcast %76 : vector<16x1xf32> to vector<16x128xf32>
    %79 = vector.broadcast %77 : vector<1x128xf32> to vector<16x128xf32>
    %80 = arith.mulf %78, %79 : vector<16x128xf32>
    %81 = arith.addf %75, %80 : vector<16x128xf32>
    %c16_18 = arith.constant 16 : index
    %c11 = arith.constant 11 : index
    %82 = vector.load %arg1[%c16_18, %c11] : memref<32x128xf32, #tpu.memory_space<vmem>>, vector<16x1xf32>
    %83 = vector.extract_strided_slice %16 {offsets = [11, 0], sizes = [1, 128], strides = [1, 1]} : vector<16x128xf32> to vector<1x128xf32>
    %84 = vector.broadcast %82 : vector<16x1xf32> to vector<16x128xf32>
    %85 = vector.broadcast %83 : vector<1x128xf32> to vector<16x128xf32>
    %86 = arith.mulf %84, %85 : vector<16x128xf32>
    %87 = arith.addf %81, %86 : vector<16x128xf32>
    %c16_19 = arith.constant 16 : index
    %c12 = arith.constant 12 : index
    %88 = vector.load %arg1[%c16_19, %c12] : memref<32x128xf32, #tpu.memory_space<vmem>>, vector<16x1xf32>
    %89 = vector.extract_strided_slice %16 {offsets = [12, 0], sizes = [1, 128], strides = [1, 1]} : vector<16x128xf32> to vector<1x128xf32>
    %90 = vector.broadcast %88 : vector<16x1xf32> to vector<16x128xf32>
    %91 = vector.broadcast %89 : vector<1x128xf32> to vector<16x128xf32>
    %92 = arith.mulf %90, %91 : vector<16x128xf32>
    %93 = arith.addf %87, %92 : vector<16x128xf32>
    %c16_20 = arith.constant 16 : index
    %c13 = arith.constant 13 : index
    %94 = vector.load %arg1[%c16_20, %c13] : memref<32x128xf32, #tpu.memory_space<vmem>>, vector<16x1xf32>
    %95 = vector.extract_strided_slice %16 {offsets = [13, 0], sizes = [1, 128], strides = [1, 1]} : vector<16x128xf32> to vector<1x128xf32>
    %96 = vector.broadcast %94 : vector<16x1xf32> to vector<16x128xf32>
    %97 = vector.broadcast %95 : vector<1x128xf32> to vector<16x128xf32>
    %98 = arith.mulf %96, %97 : vector<16x128xf32>
    %99 = arith.addf %93, %98 : vector<16x128xf32>
    %c16_21 = arith.constant 16 : index
    %c14 = arith.constant 14 : index
    %100 = vector.load %arg1[%c16_21, %c14] : memref<32x128xf32, #tpu.memory_space<vmem>>, vector<16x1xf32>
    %101 = vector.extract_strided_slice %16 {offsets = [14, 0], sizes = [1, 128], strides = [1, 1]} : vector<16x128xf32> to vector<1x128xf32>
    %102 = vector.broadcast %100 : vector<16x1xf32> to vector<16x128xf32>
    %103 = vector.broadcast %101 : vector<1x128xf32> to vector<16x128xf32>
    %104 = arith.mulf %102, %103 : vector<16x128xf32>
    %105 = arith.addf %99, %104 : vector<16x128xf32>
    %c16_22 = arith.constant 16 : index
    %c15 = arith.constant 15 : index
    %106 = vector.load %arg1[%c16_22, %c15] : memref<32x128xf32, #tpu.memory_space<vmem>>, vector<16x1xf32>
    %107 = vector.extract_strided_slice %16 {offsets = [15, 0], sizes = [1, 128], strides = [1, 1]} : vector<16x128xf32> to vector<1x128xf32>
    %108 = vector.broadcast %106 : vector<16x1xf32> to vector<16x128xf32>
    %109 = vector.broadcast %107 : vector<1x128xf32> to vector<16x128xf32>
    %110 = arith.mulf %108, %109 : vector<16x128xf32>
    %111 = arith.addf %105, %110 : vector<16x128xf32>
    %c0_23 = arith.constant 0 : index
    %c4_24 = arith.constant 4 : index
    %112 = vector.load %arg1[%c0_23, %c4_24] : memref<32x128xf32, #tpu.memory_space<vmem>>, vector<16x1xf32>
    %113 = vector.broadcast %112 : vector<16x1xf32> to vector<16x128xf32>
    %114 = arith.addf %111, %113 : vector<16x128xf32>
    %cst_25 = arith.constant 0.000000e+00 : f32
    %115 = vector.broadcast %cst_25 : f32 to vector<16x128xf32>
    %116 = arith.maximumf %114, %115 : vector<16x128xf32>
    %c0_26 = arith.constant 0 : index
    %c2_27 = arith.constant 2 : index
    %117 = vector.load %arg1[%c0_26, %c2_27] : memref<32x128xf32, #tpu.memory_space<vmem>>, vector<16x1xf32>
    %118 = vector.broadcast %117 : vector<16x1xf32> to vector<16x128xf32>
    %119 = arith.mulf %118, %116 : vector<16x128xf32>
    %cst_28 = arith.constant dense<0.000000e+00> : vector<128xf32>
    %120 = vector.multi_reduction <add>, %119, %cst_28 [0] : vector<16x128xf32> to vector<128xf32>
    %121 = vector.shape_cast %120 : vector<128xf32> to vector<1x128xf32>
    %c0_29 = arith.constant 0 : index
    %c5_30 = arith.constant 5 : index
    %122 = vector.load %arg1[%c0_29, %c5_30] : memref<32x128xf32, #tpu.memory_space<vmem>>, vector<1x1xf32>
    %123 = vector.broadcast %122 : vector<1x1xf32> to vector<1x128xf32>
    %124 = arith.addf %121, %123 : vector<1x128xf32>
    %c0_31 = arith.constant 0 : index
    %c0_32 = arith.constant 0 : index
    %125 = vector.load %arg3[%c0_31, %c0_32] : memref<1x128xf32, #tpu.memory_space<vmem>>, vector<1x128xf32>
    tpu.vector_store %arg3[%c0_31, %c0_32], %124 {strides = array<i32>} : memref<1x128xf32, #tpu.memory_space<vmem>>, vector<1x128xf32>,
    return
  }
  func.func @transform_0(%arg0: i32) -> (i32, i32) {
    %c0_i32 = arith.constant 0 : i32
    %c0_i32_0 = arith.constant 0 : i32
    %c0_i32_1 = arith.constant 0 : i32
    return %c0_i32, %c0_i32_0 : i32, i32
  }
  func.func @transform_1(%arg0: i32) -> (i32, i32) {
    %c0_i32 = arith.constant 0 : i32
    %c0_i32_0 = arith.constant 0 : i32
    return %c0_i32, %arg0 : i32, i32
  }
  func.func @transform_2(%arg0: i32) -> (i32, i32) {
    %c0_i32 = arith.constant 0 : i32
    %c0_i32_0 = arith.constant 0 : i32
    return %c0_i32, %arg0 : i32, i32
  }
}

</mosaic_0001>

<llo_original>
// kernel: tpu_custom_call.1
$region0: #{tpu_custom_call.1}
  #allocation0 [shape = 'u32[]', space=smem, size = 0x4, offset = 0x4, fixed_abs, tag = 'smem constant byte address 0x4 - core index']
  #allocation1 [shape = 'u32[144,128]{1,0:T(1,128)}', space=vmem, size = 0x12000, scoped, tag = 'internal scratch']
  %s0 = inlined_call_operand.hbm [shape: f32[32,128], index: 0, kind: input, shape index: {}]
  %s1 = inlined_call_operand.hbm [shape: f32[2,128], index: 1, kind: input, shape index: {}]
  %s2 = inlined_call_operand.hbm [shape: f32[1,128], index: 2, kind: output, shape index: {}]
  %s3 = sld [smem:[#allocation0]]
  $region26: #{tpu_custom_call.1} parent=0
    _
  %s5 = ssub.s32 1, %s3
  %s6 = scalar_select 0, %s5, %s3
  $region1: #{tpu_custom_call.1} parent=0
    #allocation2 [shape = 'u8[16384]{0}', space=vmem, size = 0x4000, scoped, tag = 'input window, operand 0, single buffered']
    #allocation3 [shape = 's32[1]{0}', space=sflag, size = 0x4, scoped, tag = 'scoped memory for tpu_custom_call.1']
    #allocation4 [shape = 's32[1]{0}', space=sflag, size = 0x4, scoped, tag = 'scoped memory for tpu_custom_call.1']
    #allocation5 [shape = 'u8[1024]{0}', space=vmem, size = 0x400, scoped, tag = 'input window, operand 1, single buffered']
    #allocation6 [shape = 's32[1]{0}', space=sflag, size = 0x4, scoped, tag = 'scoped memory for tpu_custom_call.1']
    #allocation7 [shape = 'u8[512]{0}', space=vmem, size = 0x400, scoped, tag = 'output window, operand 0, single buffered']
    %7 = vsyncpa [#allocation3], 0
    %8 = vsyncpa [#allocation6], 0
    %9 = vsyncpa [#allocation4], 0
    // Predicated region
    $region2: #{tpu_custom_call.1} parent=1 // pred_check
      _
    $region3: #{tpu_custom_call.1} parent=1 // pred_check_branch
      %11 = sbr.rel (0) target = $region5
    $region4: #{tpu_custom_call.1} parent=1 // pred_region
      %s13 = ssub.s32 512, 512
      %14 = vsyncadd [#allocation3], %s13
      %s15 = sshll.u32 [#allocation2], 4
      %s16 = int_to_ptr.vmem [resolvable:$true] %s15
      %21 = dma.hbm_to_vmem [thread:$0]  %s0, 512, %s16, [#allocation3], 128, 128, 8
    $region5: #{tpu_custom_call.1} parent=1 // pred_fallthru
      _
    // Predicated region
    $region6: #{tpu_custom_call.1} parent=1 // pred_check
      _
    $region7: #{tpu_custom_call.1} parent=1 // pred_check_branch
      %23 = sbr.rel (0) target = $region9
    $region8: #{tpu_custom_call.1} parent=1 // pred_region
      %s25 = ssub.s32 32, 32
      %26 = vsyncadd [#allocation6], %s25
      %s28 = sshll.u32 [#allocation5], 4
      %s29 = int_to_ptr.vmem [resolvable:$true] %s28
      %31 = dma.hbm_to_vmem [thread:$0]  %s1, 32, %s29, [#allocation6]
    $region9: #{tpu_custom_call.1} parent=1 // pred_fallthru
      _
    // Predicated region
    $region10: #{tpu_custom_call.1} parent=1 // pred_check
      _
    $region11: #{tpu_custom_call.1} parent=1 // pred_check_branch
      %33 = sbr.rel (0) target = $region13
    $region12: #{tpu_custom_call.1} parent=1 // pred_region
      %34 = dma.done [#allocation3], 512
    $region13: #{tpu_custom_call.1} parent=1 // pred_fallthru
      _
    // Predicated region
    $region14: #{tpu_custom_call.1} parent=1 // pred_check
      _
    $region15: #{tpu_custom_call.1} parent=1 // pred_check_branch
      %36 = sbr.rel (0) target = $region17
    $region16: #{tpu_custom_call.1} parent=1 // pred_region
      %37 = dma.done [#allocation6], 32
    $region17: #{tpu_custom_call.1} parent=1 // pred_fallthru
      _
    %v38 = vld [vmem:[#allocation5] sm:$0x3]
    %v39 = vld [vmem:[#allocation2] sm:$0xff]
    %v40 = vld [vmem:[#allocation2 + $0x8] sm:$0xff]
    %42 = vset.pattern.permute.xlu0 0
    %43 = vperm.xlu0 %42, %v39
    %v44 = vpop.permute.xlu0 %43
    %47 = vset.pattern.permute.xlu0 0
    %48 = vperm.xlu0 %47, %v40
    %v49 = vpop.permute.xlu0 %48
    %v51 = vlaneseq
    %v52 = vshrl.u32 %v51, 7
    %v53 = vsub.s32 0, %v52
    %v54 = vrot.slane %v38, %v53
    %v55 = vmul.f32 %v44, %v54
    %v56 = vmul.f32 %v49, %v54
    %57 = vset.pattern.permute.xlu0 1
    %58 = vperm.xlu0 %57, %v39
    %v59 = vpop.permute.xlu0 %58
    %61 = vset.pattern.permute.xlu0 1
    %62 = vperm.xlu0 %61, %v40
    %v63 = vpop.permute.xlu0 %62
    %v65 = vlaneseq
    %v66 = vshrl.u32 %v65, 7
    %v67 = vsub.s32 1, %v66
    %v68 = vrot.slane %v38, %v67
    %v69 = vmul.f32 %v59, %v68
    %v70 = vmul.f32 %v63, %v68
    %v71 = vadd.f32 %v55, %v69
    %v72 = vadd.f32 %v56, %v70
    %73 = vset.pattern.permute.xlu0 3
    %74 = vperm.xlu0 %73, %v39
    %v75 = vpop.permute.xlu0 %74
    %77 = vset.pattern.permute.xlu0 3
    %78 = vperm.xlu0 %77, %v40
    %v79 = vpop.permute.xlu0 %78
    %v81 = vadd.f32 %v71, %v75
    %v82 = vadd.f32 %v72, %v79
    %v83 = vmax.f32 %v81, 0.0
    %v84 = vmax.f32 %v82, 0.0
    %v85 = vld [vmem:[#allocation2 + $0x10] sm:$0xff]
    %v86 = vld [vmem:[#allocation2 + $0x18] sm:$0xff]
    %88 = vset.pattern.permute.xlu0 0
    %89 = vperm.xlu0 %88, %v85
    %v90 = vpop.permute.xlu0 %89
    %93 = vset.pattern.permute.xlu0 0
    %94 = vperm.xlu0 %93, %v86
    %v95 = vpop.permute.xlu0 %94
    %v97 = vlaneseq
    %v98 = vshrl.u32 %v97, 7
    %v99 = vsub.s32 0, %v98
    %v100 = vrot.slane %v83, %v99
    %v101 = vmul.f32 %v90, %v100
    %v102 = vmul.f32 %v95, %v100
    %103 = vset.pattern.permute.xlu0 1
    %104 = vperm.xlu0 %103, %v85
    %v105 = vpop.permute.xlu0 %104
    %107 = vset.pattern.permute.xlu0 1
    %108 = vperm.xlu0 %107, %v86
    %v109 = vpop.permute.xlu0 %108
    %v111 = vlaneseq
    %v112 = vshrl.u32 %v111, 7
    %v113 = vsub.s32 1, %v112
    %v114 = vrot.slane %v83, %v113
    %v115 = vmul.f32 %v105, %v114
    %v116 = vmul.f32 %v109, %v114
    %v117 = vadd.f32 %v101, %v115
    %v118 = vadd.f32 %v102, %v116
    %119 = vset.pattern.permute.xlu0 2
    %120 = vperm.xlu0 %119, %v85
    %v121 = vpop.permute.xlu0 %120
    %123 = vset.pattern.permute.xlu0 2
    %124 = vperm.xlu0 %123, %v86
    %v125 = vpop.permute.xlu0 %124
    %v127 = vlaneseq
    %v128 = vshrl.u32 %v127, 7
    %v129 = vsub.s32 2, %v128
    %v130 = vrot.slane %v83, %v129
    %v131 = vmul.f32 %v121, %v130
    %v132 = vmul.f32 %v125, %v130
    %v133 = vadd.f32 %v117, %v131
    %v134 = vadd.f32 %v118, %v132
    %135 = vset.pattern.permute.xlu0 3
    %136 = vperm.xlu0 %135, %v85
    %v137 = vpop.permute.xlu0 %136
    %139 = vset.pattern.permute.xlu0 3
    %140 = vperm.xlu0 %139, %v86
    %v141 = vpop.permute.xlu0 %140
    %v143 = vlaneseq
    %v144 = vshrl.u32 %v143, 7
    %v145 = vsub.s32 3, %v144
    %v146 = vrot.slane %v83, %v145
    %v147 = vmul.f32 %v137, %v146
    %v148 = vmul.f32 %v141, %v146
    %v149 = vadd.f32 %v133, %v147
    %v150 = vadd.f32 %v134, %v148
    %151 = vset.pattern.permute.xlu0 4
    %152 = vperm.xlu0 %151, %v85
    %v153 = vpop.permute.xlu0 %152
    %155 = vset.pattern.permute.xlu0 4
    %156 = vperm.xlu0 %155, %v86
    %v157 = vpop.permute.xlu0 %156
    %v159 = vlaneseq
    %v160 = vshrl.u32 %v159, 7
    %v161 = vsub.s32 4, %v160
    %v162 = vrot.slane %v83, %v161
    %v163 = vmul.f32 %v153, %v162
    %v164 = vmul.f32 %v157, %v162
    %v165 = vadd.f32 %v149, %v163
    %v166 = vadd.f32 %v150, %v164
    %167 = vset.pattern.permute.xlu0 5
    %168 = vperm.xlu0 %167, %v85
    %v169 = vpop.permute.xlu0 %168
    %171 = vset.pattern.permute.xlu0 5
    %172 = vperm.xlu0 %171, %v86
    %v173 = vpop.permute.xlu0 %172
    %v175 = vlaneseq
    %v176 = vshrl.u32 %v175, 7
    %v177 = vsub.s32 5, %v176
    %v178 = vrot.slane %v83, %v177
    %v179 = vmul.f32 %v169, %v178
    %v180 = vmul.f32 %v173, %v178
    %v181 = vadd.f32 %v165, %v179
    %v182 = vadd.f32 %v166, %v180
    %183 = vset.pattern.permute.xlu0 6
    %184 = vperm.xlu0 %183, %v85
    %v185 = vpop.permute.xlu0 %184
    %187 = vset.pattern.permute.xlu0 6
    %188 = vperm.xlu0 %187, %v86
    %v189 = vpop.permute.xlu0 %188
    %v191 = vlaneseq
    %v192 = vshrl.u32 %v191, 7
    %v193 = vsub.s32 6, %v192
    %v194 = vrot.slane %v83, %v193
    %v195 = vmul.f32 %v185, %v194
    %v196 = vmul.f32 %v189, %v194
    %v197 = vadd.f32 %v181, %v195
    %v198 = vadd.f32 %v182, %v196
    %199 = vset.pattern.permute.xlu0 7
    %200 = vperm.xlu0 %199, %v85
    %v201 = vpop.permute.xlu0 %200
    %203 = vset.pattern.permute.xlu0 7
    %204 = vperm.xlu0 %203, %v86
    %v205 = vpop.permute.xlu0 %204
    %v207 = vlaneseq
    %v208 = vshrl.u32 %v207, 7
    %v209 = vsub.s32 7, %v208
    %v210 = vrot.slane %v83, %v209
    %v211 = vmul.f32 %v201, %v210
    %v212 = vmul.f32 %v205, %v210
    %v213 = vadd.f32 %v197, %v211
    %v214 = vadd.f32 %v198, %v212
    %215 = vset.pattern.permute.xlu0 8
    %216 = vperm.xlu0 %215, %v85
    %v217 = vpop.permute.xlu0 %216
    %219 = vset.pattern.permute.xlu0 8
    %220 = vperm.xlu0 %219, %v86
    %v221 = vpop.permute.xlu0 %220
    %v223 = vlaneseq
    %v224 = vshrl.u32 %v223, 7
    %v225 = vsub.s32 0, %v224
    %v226 = vrot.slane %v84, %v225
    %v227 = vmul.f32 %v217, %v226
    %v228 = vmul.f32 %v221, %v226
    %v229 = vadd.f32 %v213, %v227
    %v230 = vadd.f32 %v214, %v228
    %231 = vset.pattern.permute.xlu0 9
    %232 = vperm.xlu0 %231, %v85
    %v233 = vpop.permute.xlu0 %232
    %235 = vset.pattern.permute.xlu0 9
    %236 = vperm.xlu0 %235, %v86
    %v237 = vpop.permute.xlu0 %236
    %v239 = vlaneseq
    %v240 = vshrl.u32 %v239, 7
    %v241 = vsub.s32 1, %v240
    %v242 = vrot.slane %v84, %v241
    %v243 = vmul.f32 %v233, %v242
    %v244 = vmul.f32 %v237, %v242
    %v245 = vadd.f32 %v229, %v243
    %v246 = vadd.f32 %v230, %v244
    %247 = vset.pattern.permute.xlu0 10
    %248 = vperm.xlu0 %247, %v85
    %v249 = vpop.permute.xlu0 %248
    %251 = vset.pattern.permute.xlu0 10
    %252 = vperm.xlu0 %251, %v86
    %v253 = vpop.permute.xlu0 %252
    %v255 = vlaneseq
    %v256 = vshrl.u32 %v255, 7
    %v257 = vsub.s32 2, %v256
    %v258 = vrot.slane %v84, %v257
    %v259 = vmul.f32 %v249, %v258
    %v260 = vmul.f32 %v253, %v258
    %v261 = vadd.f32 %v245, %v259
    %v262 = vadd.f32 %v246, %v260
    %263 = vset.pattern.permute.xlu0 11
    %264 = vperm.xlu0 %263, %v85
    %v265 = vpop.permute.xlu0 %264
    %267 = vset.pattern.permute.xlu0 11
    %268 = vperm.xlu0 %267, %v86
    %v269 = vpop.permute.xlu0 %268
    %v271 = vlaneseq
    %v272 = vshrl.u32 %v271, 7
    %v273 = vsub.s32 3, %v272
    %v274 = vrot.slane %v84, %v273
    %v275 = vmul.f32 %v265, %v274
    %v276 = vmul.f32 %v269, %v274
    %v277 = vadd.f32 %v261, %v275
    %v278 = vadd.f32 %v262, %v276
    %279 = vset.pattern.permute.xlu0 12
    %280 = vperm.xlu0 %279, %v85
    %v281 = vpop.permute.xlu0 %280
    %283 = vset.pattern.permute.xlu0 12
    %284 = vperm.xlu0 %283, %v86
    %v285 = vpop.permute.xlu0 %284
    %v287 = vlaneseq
    %v288 = vshrl.u32 %v287, 7
    %v289 = vsub.s32 4, %v288
    %v290 = vrot.slane %v84, %v289
    %v291 = vmul.f32 %v281, %v290
    %v292 = vmul.f32 %v285, %v290
    %v293 = vadd.f32 %v277, %v291
    %v294 = vadd.f32 %v278, %v292
    %295 = vset.pattern.permute.xlu0 13
    %296 = vperm.xlu0 %295, %v85
    %v297 = vpop.permute.xlu0 %296
    %299 = vset.pattern.permute.xlu0 13
    %300 = vperm.xlu0 %299, %v86
    %v301 = vpop.permute.xlu0 %300
    %v303 = vlaneseq
    %v304 = vshrl.u32 %v303, 7
    %v305 = vsub.s32 5, %v304
    %v306 = vrot.slane %v84, %v305
    %v307 = vmul.f32 %v297, %v306
    %v308 = vmul.f32 %v301, %v306
    %v309 = vadd.f32 %v293, %v307
    %v310 = vadd.f32 %v294, %v308
    %311 = vset.pattern.permute.xlu0 14
    %312 = vperm.xlu0 %311, %v85
    %v313 = vpop.permute.xlu0 %312
    %315 = vset.pattern.permute.xlu0 14
    %316 = vperm.xlu0 %315, %v86
    %v317 = vpop.permute.xlu0 %316
    %v319 = vlaneseq
    %v320 = vshrl.u32 %v319, 7
    %v321 = vsub.s32 6, %v320
    %v322 = vrot.slane %v84, %v321
    %v323 = vmul.f32 %v313, %v322
    %v324 = vmul.f32 %v317, %v322
    %v325 = vadd.f32 %v309, %v323
    %v326 = vadd.f32 %v310, %v324
    %327 = vset.pattern.permute.xlu0 15
    %328 = vperm.xlu0 %327, %v85
    %v329 = vpop.permute.xlu0 %328
    %331 = vset.pattern.permute.xlu0 15
    %332 = vperm.xlu0 %331, %v86
    %v333 = vpop.permute.xlu0 %332
    %v335 = vlaneseq
    %v336 = vshrl.u32 %v335, 7
    %v337 = vsub.s32 7, %v336
    %v338 = vrot.slane %v84, %v337
    %v339 = vmul.f32 %v329, %v338
    %v340 = vmul.f32 %v333, %v338
    %v341 = vadd.f32 %v325, %v339
    %v342 = vadd.f32 %v326, %v340
    %343 = vset.pattern.permute.xlu0 4
    %344 = vperm.xlu0 %343, %v39
    %v345 = vpop.permute.xlu0 %344
    %347 = vset.pattern.permute.xlu0 4
    %348 = vperm.xlu0 %347, %v40
    %v349 = vpop.permute.xlu0 %348
    %v351 = vadd.f32 %v341, %v345
    %v352 = vadd.f32 %v342, %v349
    %v353 = vmax.f32 %v351, 0.0
    %v354 = vmax.f32 %v352, 0.0
    %355 = vset.pattern.permute.xlu0 2
    %356 = vperm.xlu0 %355, %v39
    %v357 = vpop.permute.xlu0 %356
    %359 = vset.pattern.permute.xlu0 2
    %360 = vperm.xlu0 %359, %v40
    %v361 = vpop.permute.xlu0 %360
    %v363 = vmul.f32 %v357, %v353
    %v364 = vmul.f32 %v361, %v354
    %v365 = vadd.f32 %v363, %v364
    %v366 = vrot.slane %v365, 4
    %v367 = vadd.f32 %v365, %v366
    %v368 = vrot.slane %v367, 2
    %v369 = vadd.f32 %v367, %v368
    %v370 = vrot.slane %v369, 1
    %v371 = vadd.f32 %v369, %v370
    %v372 = vld [vmem:[#allocation2] sm:$0x1]
    %374 = vset.pattern.permute.xlu0 5
    %375 = vperm.xlu0 %374, %v372
    %v376 = vpop.permute.xlu0 %375
    %v378 = vadd.f32 %v371, %v376
    %379 = vst [vmem:[#allocation7] sm:$0x1] %v378
    // Predicated region
    $region18: #{tpu_custom_call.1} parent=1 // pred_check
      _
    $region19: #{tpu_custom_call.1} parent=1 // pred_check_branch
      %381 = sbr.rel (0) target = $region21
    $region20: #{tpu_custom_call.1} parent=1 // pred_region
      %s383 = ssub.s32 16, 16
      %384 = vsyncadd [#allocation4], %s383
      %s386 = sshll.u32 [#allocation7], 4
      %s387 = int_to_ptr.vmem [resolvable:$true] %s386
      %389 = dma.vmem_to_hbm [thread:$0]  %s387, 16, %s2, [#allocation4]
    $region21: #{tpu_custom_call.1} parent=1 // pred_fallthru
      _
    // Predicated region
    $region22: #{tpu_custom_call.1} parent=1 // pred_check
      _
    $region23: #{tpu_custom_call.1} parent=1 // pred_check_branch
      %391 = sbr.rel (0) target = $region25
    $region24: #{tpu_custom_call.1} parent=1 // pred_region
      %392 = dma.done [#allocation4], 16
    $region25: #{tpu_custom_call.1} parent=1 // pred_fallthru
      _
    %393 = vsyncpa [#allocation3], 1
    %394 = vsyncpa [#allocation6], 1
    %395 = vsyncpa [#allocation4], 1

</llo_original>
